<compile_context>
chip_gen: v6e
topology: v6e:2x2x1
jax: 0.10.0
libtpu: 0.0.40
codegen_flags: <defaults>
</compile_context>

<pallas_src>
import jax
import jax.numpy as jnp
from jax.experimental import pallas as pl
from jax.experimental.pallas import tpu as pltpu

IN_FEATURES = 17          # length of the 1-D input signal
HIDDEN = 128
N_CLASSES = 18 * 8        # 144

K_PAD = 32                # 17 -> 32 : 16-sublane-aligned bf16 MXU contraction dim
N_PAD = 256               # 144 -> 256 : lane-dense output / full MXU N passes


def _round_up(n, m):
    return ((n + m - 1) // m) * m


# ----------------------------------------------------------------------------
# Fused kernel: conv(1x1)+ReLU -> Linear(32p,128)[BN folded]+ReLU -> Linear(128,256p)
# ----------------------------------------------------------------------------
def fused_mlp_kernel(x_ref, cw_ref, cb_ref, w1_ref, b1_ref, w2_ref, b2_ref, out_ref):
    # x_ref : (TB, 32)  f32 VMEM tile (features zero-padded 17 -> 32)
    # cw/cb : (1, 1)    f32 SMEM scalars (conv weight / bias)
    # w1    : (32, 128) bf16 (BN scale folded, rows 17..31 zero)   -- VMEM resident
    # b1    : (1, 128)  f32  (BN shift folded)                     -- VMEM resident
    # w2    : (128,256) bf16 (cols 144..255 zero)                  -- VMEM resident
    # b2    : (1, 256)  f32                                        -- VMEM resident
    # out   : (TB, 256) f32  lane-dense tile
    x = x_ref[...]

    # Conv1d(1, 1, kernel_size=1) + ReLU  ==  relu(cw*x + cb) elementwise.
    # (Padded feature columns produce relu(cb), but w1's padded rows are zero.)
    h0 = jnp.maximum(x * cw_ref[0, 0] + cb_ref[0, 0], 0.0)

    # Linear(17,128) with inference-mode BatchNorm1d folded in, then ReLU.
    h1 = jnp.dot(h0.astype(w1_ref.dtype), w1_ref[...],
                 preferred_element_type=jnp.float32) + b1_ref[...]
    h1 = jnp.maximum(h1, 0.0)

    # Linear(128, 144) (N padded to 256; tail sliced off in the wrapper).
    out_ref[...] = jnp.dot(h1.astype(w2_ref.dtype), w2_ref[...],
                           preferred_element_type=jnp.float32) + b2_ref[...]


@jax.jit
def mlp_forward(params, x):
    B = x.shape[0]
    # Batch tile: sublane-aligned; small batches -> one step, large batches ->
    # a pipelined grid with the weights fetched exactly once (constant index_map).
    TB = min(256, _round_up(B, 8))
    B_pad = _round_up(B, TB)
    grid = (B_pad // TB,)

    # Zero-pad batch to a multiple of TB and features 17 -> 32.
    x_pad = jnp.pad(x, ((0, B_pad - B), (0, K_PAD - IN_FEATURES)))

    flops = 2 * B_pad * (K_PAD * HIDDEN + HIDDEN * N_PAD)
    bytes_accessed = (K_PAD * HIDDEN * 2 + HIDDEN * 4          # w1, b1
                      + HIDDEN * N_PAD * 2 + N_PAD * 4         # w2, b2
                      + B_pad * K_PAD * 4 + B_pad * N_PAD * 4  # x, out
                      + 8)                                     # conv scalars

    out = pl.pallas_call(
        fused_mlp_kernel,
        out_shape=jax.ShapeDtypeStruct((B_pad, N_PAD), jnp.float32),
        grid=grid,
        in_specs=[
            pl.BlockSpec((TB, K_PAD), lambda i: (i, 0)),                      # x tile
            pl.BlockSpec((1, 1), lambda i: (0, 0),
                         memory_space=pltpu.MemorySpace.SMEM),                # conv_w
            pl.BlockSpec((1, 1), lambda i: (0, 0),
                         memory_space=pltpu.MemorySpace.SMEM),                # conv_b
            pl.BlockSpec((K_PAD, HIDDEN), lambda i: (0, 0)),                  # w1 (resident)
            pl.BlockSpec((1, HIDDEN), lambda i: (0, 0)),                      # b1 (resident)
            pl.BlockSpec((HIDDEN, N_PAD), lambda i: (0, 0)),                  # w2 (resident)
            pl.BlockSpec((1, N_PAD), lambda i: (0, 0)),                       # b2 (resident)
        ],
        out_specs=pl.BlockSpec((TB, N_PAD), lambda i: (i, 0)),
        compiler_params=pltpu.CompilerParams(
            dimension_semantics=("parallel",),          # batch tiles independent (v7x 2 TCs)
            vmem_limit_bytes=4 * 1024 * 1024),
        cost_estimate=pl.CostEstimate(flops=flops, transcendentals=0,
                                      bytes_accessed=bytes_accessed),
    )(x_pad, params['conv_w'], params['conv_b'],
      params['w1'], params['b1'], params['w2'], params['b2'])

    return out[:B, :N_CLASSES]


# ----------------------------------------------------------------------------
# Deterministic synthetic parameters (shapes follow MLP.__init__), with the
# BatchNorm running stats folded into the first Linear and tile-aligned padding
# applied on the host.
# ----------------------------------------------------------------------------
def init_params(key):
    keys = iter(jax.random.split(key, 16))

    def nrm(shape, std):
        return (std * jax.random.normal(next(keys), shape)).astype(jnp.float32)

    # convnet: Conv1d(1, 1, kernel_size=1, bias=True) -> scalar weight / bias
    conv_w = (0.75 + nrm((1, 1), 0.25)).astype(jnp.float32)
    conv_b = nrm((1, 1), 0.1)

    # mlpnet: Linear(17, 128) -> BatchNorm1d(128) -> ReLU -> Linear(128, 144)
    w1 = nrm((IN_FEATURES, HIDDEN), 0.2)           # stored pre-transposed (in, out)
    b1 = nrm((1, HIDDEN), 0.05)
    gamma = 1.0 + nrm((1, HIDDEN), 0.1)
    beta = nrm((1, HIDDEN), 0.1)
    rmean = nrm((1, HIDDEN), 0.1)
    rvar = 0.5 + jax.random.uniform(next(keys), (1, HIDDEN), dtype=jnp.float32)

    scale = gamma / jnp.sqrt(rvar + 1e-5)          # inference-mode BN fold
    w1_f = w1 * scale
    b1_f = ((b1 - rmean) * scale + beta).astype(jnp.float32)
    # Pad K 17 -> 32 with zero rows; bf16 for the MXU (f32 copy is tiny if exact
    # parity with an f32 reference is ever required).
    w1_pad = (jnp.zeros((K_PAD, HIDDEN), jnp.float32)
              .at[:IN_FEATURES].set(w1_f)).astype(jnp.bfloat16)

    w2 = nrm((HIDDEN, N_CLASSES), 0.1)
    b2 = nrm((1, N_CLASSES), 0.05)
    # Pad N 144 -> 256: lane-dense stores + full MXU passes; wrapper slices back.
    w2_pad = (jnp.zeros((HIDDEN, N_PAD), jnp.float32)
              .at[:, :N_CLASSES].set(w2)).astype(jnp.bfloat16)
    b2_pad = jnp.zeros((1, N_PAD), jnp.float32).at[:, :N_CLASSES].set(b2)

    return {
        'conv_w': conv_w, 'conv_b': conv_b,
        'w1': w1_pad, 'b1': b1_f,
        'w2': w2_pad, 'b2': b2_pad,
    }


# Pure-JAX reference using the exact same folded/padded/quantized parameters.
def reference_forward(params, x):
    xp = jnp.pad(x, ((0, 0), (0, K_PAD - IN_FEATURES)))
    h0 = jnp.maximum(xp * params['conv_w'][0, 0] + params['conv_b'][0, 0], 0.0)
    h1 = jnp.dot(h0.astype(jnp.bfloat16), params['w1'],
                 preferred_element_type=jnp.float32) + params['b1']
    h1 = jnp.maximum(h1, 0.0)
    out = jnp.dot(h1.astype(jnp.bfloat16), params['w2'],
                  preferred_element_type=jnp.float32) + params['b2']
    return out[:, :N_CLASSES]


if __name__ == "__main__":
    key = jax.random.PRNGKey(0)
    kp, kx = jax.random.split(key, 2)
    params = init_params(kp)

    B = 4
    x = jax.random.normal(kx, (B, IN_FEATURES), dtype=jnp.float32)

    out = mlp_forward(params, x)
    jax.block_until_ready(out)

    assert out.shape == (B, N_CLASSES)
    assert bool(jnp.all(jnp.isfinite(out)))

    ref = reference_forward(params, x)
    assert bool(jnp.allclose(out, ref, rtol=1e-2, atol=1e-2))

    print("KERNEL_OK")
</pallas_src>

<mosaic_0001>
module attributes {stable_mosaic.version = 11 : i64} {
  func.func @fused_mlp_kernel(%arg0: i32, %arg1: memref<8x32xf32, #tpu.memory_space<vmem>>, %arg2: memref<1x1xf32, #tpu.memory_space<smem>>, %arg3: memref<1x1xf32, #tpu.memory_space<smem>>, %arg4: memref<32x128xbf16, #tpu.memory_space<vmem>>, %arg5: memref<1x128xf32, #tpu.memory_space<vmem>>, %arg6: memref<128x256xbf16, #tpu.memory_space<vmem>>, %arg7: memref<1x256xf32, #tpu.memory_space<vmem>>, %arg8: memref<8x256xf32, #tpu.memory_space<vmem>>) attributes {dimension_semantics = [#tpu.dimension_semantics<parallel>], iteration_bounds = array<i64: 1>, scalar_prefetch = 0 : i64, scratch_operands = 0 : i64, tpu.core_type = #tpu.core_type<tc>, window_params = [{transform_indices = @transform_0, window_bounds = array<i64: 8, 32>}, {transform_indices = @transform_1, window_bounds = array<i64: 1, 1>}, {transform_indices = @transform_2, window_bounds = array<i64: 1, 1>}, {pipeline_mode = #tpu.pipeline_mode<synchronous>, transform_indices = @transform_3, window_bounds = array<i64: 32, 128>}, {pipeline_mode = #tpu.pipeline_mode<synchronous>, transform_indices = @transform_4, window_bounds = array<i64: 1, 128>}, {pipeline_mode = #tpu.pipeline_mode<synchronous>, transform_indices = @transform_5, window_bounds = array<i64: 128, 256>}, {pipeline_mode = #tpu.pipeline_mode<synchronous>, transform_indices = @transform_6, window_bounds = array<i64: 1, 256>}, {transform_indices = @transform_7, window_bounds = array<i64: 8, 256>}]} {
    %c0 = arith.constant 0 : index
    %c0_0 = arith.constant 0 : index
    %0 = vector.load %arg1[%c0, %c0_0] : memref<8x32xf32, #tpu.memory_space<vmem>>, vector<8x32xf32>
    %c0_1 = arith.constant 0 : index
    %c0_2 = arith.constant 0 : index
    %1 = memref.load %arg2[%c0_1, %c0_2] : memref<1x1xf32, #tpu.memory_space<smem>>
    %2 = vector.broadcast %1 : f32 to vector<8x32xf32>
    %3 = arith.mulf %0, %2 : vector<8x32xf32>
    %c0_3 = arith.constant 0 : index
    %c0_4 = arith.constant 0 : index
    %4 = memref.load %arg3[%c0_3, %c0_4] : memref<1x1xf32, #tpu.memory_space<smem>>
    %5 = vector.broadcast %4 : f32 to vector<8x32xf32>
    %6 = arith.addf %3, %5 : vector<8x32xf32>
    %cst = arith.constant 0.000000e+00 : f32
    %7 = vector.broadcast %cst : f32 to vector<8x32xf32>
    %8 = arith.maximumf %6, %7 : vector<8x32xf32>
    %9 = arith.truncf %8 : vector<8x32xf32> to vector<8x32xbf16>
    %c0_5 = arith.constant 0 : index
    %c0_6 = arith.constant 0 : index
    %10 = vector.load %arg4[%c0_5, %c0_6] : memref<32x128xbf16, #tpu.memory_space<vmem>>, vector<32x128xbf16>
    %cst_7 = arith.constant dense<0.000000e+00> : vector<8x128xf32>
    %11 = tpu.matmul %9, %10, %cst_7 {dimension_numbers = #tpu.dot_dimension_numbers<[1], [0], [0], [1], [0, 0, 1, 1], [], []>} : vector<8x32xbf16>, vector<32x128xbf16>, vector<8x128xf32> -> vector<8x128xf32>
    %c0_8 = arith.constant 0 : index
    %c0_9 = arith.constant 0 : index
    %12 = vector.load %arg5[%c0_8, %c0_9] : memref<1x128xf32, #tpu.memory_space<vmem>>, vector<1x128xf32>
    %13 = vector.broadcast %12 : vector<1x128xf32> to vector<8x128xf32>
    %14 = arith.addf %11, %13 : vector<8x128xf32>
    %cst_10 = arith.constant 0.000000e+00 : f32
    %15 = vector.broadcast %cst_10 : f32 to vector<8x128xf32>
    %16 = arith.maximumf %14, %15 : vector<8x128xf32>
    %17 = arith.truncf %16 : vector<8x128xf32> to vector<8x128xbf16>
    %c0_11 = arith.constant 0 : index
    %c0_12 = arith.constant 0 : index
    %18 = vector.load %arg6[%c0_11, %c0_12] : memref<128x256xbf16, #tpu.memory_space<vmem>>, vector<128x256xbf16>
    %cst_13 = arith.constant dense<0.000000e+00> : vector<8x256xf32>
    %19 = tpu.matmul %17, %18, %cst_13 {dimension_numbers = #tpu.dot_dimension_numbers<[1], [0], [0], [1], [0, 0, 1, 1], [], []>} : vector<8x128xbf16>, vector<128x256xbf16>, vector<8x256xf32> -> vector<8x256xf32>
    %c0_14 = arith.constant 0 : index
    %c0_15 = arith.constant 0 : index
    %20 = vector.load %arg7[%c0_14, %c0_15] : memref<1x256xf32, #tpu.memory_space<vmem>>, vector<1x256xf32>
    %21 = vector.broadcast %20 : vector<1x256xf32> to vector<8x256xf32>
    %22 = arith.addf %19, %21 : vector<8x256xf32>
    %c0_16 = arith.constant 0 : index
    %c0_17 = arith.constant 0 : index
    %23 = vector.load %arg8[%c0_16, %c0_17] : memref<8x256xf32, #tpu.memory_space<vmem>>, vector<8x256xf32>
    tpu.vector_store %arg8[%c0_16, %c0_17], %22 {strides = array<i32>} : memref<8x256xf32, #tpu.memory_space<vmem>>, vector<8x256xf32>,
    return
  }
  func.func @transform_0(%arg0: i32) -> (i32, i32) {
    %c0_i32 = arith.constant 0 : i32
    %c0_i32_0 = arith.constant 0 : i32
    return %arg0, %c0_i32 : i32, i32
  }
  func.func @transform_1(%arg0: i32) -> (i32, i32) {
    %c0_i32 = arith.constant 0 : i32
    %c0_i32_0 = arith.constant 0 : i32
    %c0_i32_1 = arith.constant 0 : i32
    return %c0_i32, %c0_i32_0 : i32, i32
  }
  func.func @transform_2(%arg0: i32) -> (i32, i32) {
    %c0_i32 = arith.constant 0 : i32
    %c0_i32_0 = arith.constant 0 : i32
    %c0_i32_1 = arith.constant 0 : i32
    return %c0_i32, %c0_i32_0 : i32, i32
  }
  func.func @transform_3(%arg0: i32) -> (i32, i32) {
    %c0_i32 = arith.constant 0 : i32
    %c0_i32_0 = arith.constant 0 : i32
    %c0_i32_1 = arith.constant 0 : i32
    return %c0_i32, %c0_i32_0 : i32, i32
  }
  func.func @transform_4(%arg0: i32) -> (i32, i32) {
    %c0_i32 = arith.constant 0 : i32
    %c0_i32_0 = arith.constant 0 : i32
    %c0_i32_1 = arith.constant 0 : i32
    return %c0_i32, %c0_i32_0 : i32, i32
  }
  func.func @transform_5(%arg0: i32) -> (i32, i32) {
    %c0_i32 = arith.constant 0 : i32
    %c0_i32_0 = arith.constant 0 : i32
    %c0_i32_1 = arith.constant 0 : i32
    return %c0_i32, %c0_i32_0 : i32, i32
  }
  func.func @transform_6(%arg0: i32) -> (i32, i32) {
    %c0_i32 = arith.constant 0 : i32
    %c0_i32_0 = arith.constant 0 : i32
    %c0_i32_1 = arith.constant 0 : i32
    return %c0_i32, %c0_i32_0 : i32, i32
  }
  func.func @transform_7(%arg0: i32) -> (i32, i32) {
    %c0_i32 = arith.constant 0 : i32
    %c0_i32_0 = arith.constant 0 : i32
    return %arg0, %c0_i32 : i32, i32
  }
}

</mosaic_0001>

<llo_original>
// kernel: mlp_forward.1
$region0: #{mlp_forward.1}
  #allocation0 [shape = 'u32[]', space=smem, size = 0x4, offset = 0x4, fixed_abs, tag = 'smem constant byte address 0x4 - core index']
  #allocation1 [shape = 'u32[144,128]{1,0:T(1,128)}', space=vmem, size = 0x12000, scoped, tag = 'internal scratch']
  #allocation2 [shape = 'f32[1,1]{1,0:T(1,128)S(6)}', space=smem, size = 0x200, scoped, tag = 'scoped memory for mlp_forward.1']
  #allocation3 [shape = 'f32[1,1]{1,0:T(1,128)S(6)}', space=smem, size = 0x200, scoped, tag = 'scoped memory for mlp_forward.1']
  %s0 = inlined_call_operand.vmem [shape: f32[8,32], index: 0, kind: input, shape index: {}]
  %s1 = inlined_call_operand.<no memory space> [shape: f32[1,1], index: 1, kind: input, shape index: {}]
  %s2 = inlined_call_operand.<no memory space> [shape: f32[1,1], index: 2, kind: input, shape index: {}]
  %s3 = inlined_call_operand.vmem [shape: bf16[32,128], index: 3, kind: input, shape index: {}]
  %s4 = inlined_call_operand.hbm [shape: f32[1,128], index: 4, kind: input, shape index: {}]
  %s5 = inlined_call_operand.hbm [shape: bf16[128,256], index: 5, kind: input, shape index: {}]
  %s6 = inlined_call_operand.vmem [shape: f32[1,256], index: 6, kind: input, shape index: {}]
  %s7 = inlined_call_operand.vmem [shape: f32[8,256], index: 7, kind: output, shape index: {}]
  %s8 = sld [smem:[#allocation0]]
  $region46: #{mlp_forward.1} parent=0
    _
  %s10 = ssub.s32 1, %s8
  %s11 = scalar_select 0, %s10, %s8
  %12 = sst [smem:[#allocation2]] %s1
  %13 = sst [smem:[#allocation3]] %s2
  $region1: #{mlp_forward.1} parent=0
    #allocation4 [shape = 'u8[512]{0}', space=vmem, size = 0x400, scoped, tag = 'input window, operand 4, single buffered']
    #allocation5 [shape = 's32[1]{0}', space=sflag, size = 0x4, scoped, tag = 'scoped memory for mlp_forward.1']
    #allocation6 [shape = 'u8[65536]{0}', space=vmem, size = 0x10000, scoped, tag = 'input window, operand 5, single buffered']
    #allocation7 [shape = 's32[1]{0}', space=sflag, size = 0x4, scoped, tag = 'scoped memory for mlp_forward.1']
    %14 = vsyncpa [#allocation5], 0
    %15 = vsyncpa [#allocation7], 0
    // Predicated region
    $region2: #{mlp_forward.1} parent=1 // pred_check
      _
    $region3: #{mlp_forward.1} parent=1 // pred_check_branch
      %17 = sbr.rel (0) target = $region5
    $region4: #{mlp_forward.1} parent=1 // pred_region
      _
    $region5: #{mlp_forward.1} parent=1 // pred_fallthru
      _
    // Predicated region
    $region6: #{mlp_forward.1} parent=1 // pred_check
      _
    $region7: #{mlp_forward.1} parent=1 // pred_check_branch
      %19 = sbr.rel (0) target = $region9
    $region8: #{mlp_forward.1} parent=1 // pred_region
      _
    $region9: #{mlp_forward.1} parent=1 // pred_fallthru
      _
    // Predicated region
    $region10: #{mlp_forward.1} parent=1 // pred_check
      _
    $region11: #{mlp_forward.1} parent=1 // pred_check_branch
      %21 = sbr.rel (0) target = $region13
    $region12: #{mlp_forward.1} parent=1 // pred_region
      _
    $region13: #{mlp_forward.1} parent=1 // pred_fallthru
      _
    // Predicated region
    $region14: #{mlp_forward.1} parent=1 // pred_check
      _
    $region15: #{mlp_forward.1} parent=1 // pred_check_branch
      %23 = sbr.rel (0) target = $region17
    $region16: #{mlp_forward.1} parent=1 // pred_region
      _
    $region17: #{mlp_forward.1} parent=1 // pred_fallthru
      _
    // Predicated region
    $region18: #{mlp_forward.1} parent=1 // pred_check
      _
    $region19: #{mlp_forward.1} parent=1 // pred_check_branch
      %25 = sbr.rel (0) target = $region21
    $region20: #{mlp_forward.1} parent=1 // pred_region
      %s27 = ssub.s32 16, 16
      %28 = vsyncadd [#allocation5], %s27
      %s30 = sshll.u32 [#allocation4], 4
      %s31 = int_to_ptr.vmem [resolvable:$true] %s30
      %33 = dma.hbm_to_vmem [thread:$0]  %s4, 16, %s31, [#allocation5]
    $region21: #{mlp_forward.1} parent=1 // pred_fallthru
      _
    // Predicated region
    $region22: #{mlp_forward.1} parent=1 // pred_check
      _
    $region23: #{mlp_forward.1} parent=1 // pred_check_branch
      %35 = sbr.rel (0) target = $region25
    $region24: #{mlp_forward.1} parent=1 // pred_region
      %s37 = ssub.s32 2048, 2048
      %38 = vsyncadd [#allocation7], %s37
      %s39 = sshll.u32 [#allocation6], 4
      %s40 = int_to_ptr.vmem [resolvable:$true] %s39
      %45 = dma.hbm_to_vmem [thread:$0]  %s5, 2048, %s40, [#allocation7], 128, 128, 8
    $region25: #{mlp_forward.1} parent=1 // pred_fallthru
      _
    // Predicated region
    $region26: #{mlp_forward.1} parent=1 // pred_check
      _
    $region27: #{mlp_forward.1} parent=1 // pred_check_branch
      %47 = sbr.rel (0) target = $region29
    $region28: #{mlp_forward.1} parent=1 // pred_region
      _
    $region29: #{mlp_forward.1} parent=1 // pred_fallthru
      _
    // Predicated region
    $region30: #{mlp_forward.1} parent=1 // pred_check
      _
    $region31: #{mlp_forward.1} parent=1 // pred_check_branch
      %49 = sbr.rel (0) target = $region33
    $region32: #{mlp_forward.1} parent=1 // pred_region
      %50 = dma.done [#allocation5], 16
    $region33: #{mlp_forward.1} parent=1 // pred_fallthru
      _
    // Predicated region
    $region34: #{mlp_forward.1} parent=1 // pred_check
      _
    $region35: #{mlp_forward.1} parent=1 // pred_check_branch
      %52 = sbr.rel (0) target = $region37
    $region36: #{mlp_forward.1} parent=1 // pred_region
      %53 = dma.done [#allocation7], 2048
    $region37: #{mlp_forward.1} parent=1 // pred_fallthru
      _
    %v55 = vld [vmem:[%s0] sm:$0xff]
    %s56 = sld [smem:[#allocation2]]
    %v57 = vstv %s56
    %v58 = vmul.f32 %v55, %v57
    %s59 = sld [smem:[#allocation3]]
    %v60 = vstv %s59
    %v61 = vadd.f32 %v58, %v60
    %v62 = vmax.f32 %v61, 0.0
    %v63 = vpack.c.bf16 %v62, %v62
    %v64 = vld [vmem:[%s3] sm:$0xf]
    %v65 = vld [vmem:[%s3 + $0x4] sm:$0xf]
    %v66 = vld [vmem:[%s3 + $0x8] sm:$0xf]
    %v67 = vld [vmem:[%s3 + $0xc] sm:$0xf]
    %v68 = vld [vmem:[#allocation4] sm:$0x1]
    %v70 = vlaneseq
    %v71 = vshrl.u32 %v70, 7
    %v72 = vsub.s32 0, %v71
    %v73 = vrot.slane %v68, %v72
    %v79 = vunpack.c.l.b16 %v64
    %v80 = vunpack.c.l.b16 %v65
    %v81 = vunpack.c.l.b16 %v66
    %v82 = vunpack.c.l.b16 %v67
    %v83 = vpack.c.b16 %v80, %v79
    %v84 = vpack.c.b16 %v82, %v81
    %vm87 = vcmask 261120
    %v89 = vsel %vm87, %v63, 0
    %91 = vmatprep.subr.bf16.mxu0 0
    %92 = vmatpush1.bf16.msra.mxu0 0
    %93 = vmatprep.subr.bf16.mxu0 0
    %94 = vmatpush1.bf16.msra.mxu0 0
    %95 = vmatprep.subr.bf16.mxu0 0
    %96 = vmatpush1.bf16.msra.mxu0 0
    %97 = vmatprep.subr.bf16.mxu0 0
    %98 = vmatpush1.bf16.msra.mxu0 0
    %99 = vmatprep.subr.bf16.mxu0 0
    %100 = vmatpush1.bf16.msra.mxu0 0
    %101 = vmatprep.subr.bf16.mxu0 0
    %102 = vmatpush1.bf16.msra.mxu0 0
    %103 = vmatprep.subr.bf16.mxu0 0
    %104 = vmatpush1.bf16.msra.mxu0 %v84
    %105 = vmatprep.subr.bf16.mxu0 0
    %106 = vmatpush1.bf16.msra.mxu0 %v83
    %107 = vmatprep.subr.bf16.mxu0 0
    %108 = vmatpush2.bf16.msra.mxu0 0
    %109 = vmatprep.subr.bf16.mxu0 0
    %110 = vmatpush2.bf16.msra.mxu0 0
    %111 = vmatprep.subr.bf16.mxu0 0
    %112 = vmatpush2.bf16.msra.mxu0 0
    %113 = vmatprep.subr.bf16.mxu0 0
    %114 = vmatpush2.bf16.msra.mxu0 0
    %115 = vmatprep.subr.bf16.mxu0 0
    %116 = vmatpush2.bf16.msra.mxu0 0
    %117 = vmatprep.subr.bf16.mxu0 0
    %118 = vmatpush2.bf16.msra.mxu0 0
    %119 = vmatprep.subr.bf16.mxu0 0
    %120 = vmatpush2.bf16.msra.mxu0 0
    %121 = vmatprep.subr.bf16.mxu0 0
    %122 = vmatpush2.bf16.msra.mxu0 0
    %123 = vmatprep.mubr.bf16.mxu0 0
    %124 = vmatmul.mubr.bf16.gmra.mxu0 %v89
    %v125 = vpop.f32.mrf.mxu0
    %v126 = vadd.f32 %v73, %v125
    %v127 = vpop.f32.mrf.mxu0
    %v128 = vpop.f32.mrf.mxu0
    %v129 = vpop.f32.mrf.mxu0
    %130 = vdwg.mxu0
    %v131 = vmax.f32 %v126, 0.0
    %v132 = vpack.c.bf16 %v131, %v131
    %v133 = vld [vmem:[#allocation6] sm:$0xff]
    %v134 = vld [vmem:[#allocation6 + $0x8] sm:$0xff]
    %v135 = vld [vmem:[#allocation6 + $0x10] sm:$0xff]
    %v136 = vld [vmem:[#allocation6 + $0x18] sm:$0xff]
    %v137 = vld [vmem:[#allocation6 + $0x20] sm:$0xff]
    %v138 = vld [vmem:[#allocation6 + $0x28] sm:$0xff]
    %v139 = vld [vmem:[#allocation6 + $0x30] sm:$0xff]
    %v140 = vld [vmem:[#allocation6 + $0x38] sm:$0xff]
    %v141 = vld [vmem:[#allocation6 + $0x40] sm:$0xff]
    %v142 = vld [vmem:[#allocation6 + $0x48] sm:$0xff]
    %v143 = vld [vmem:[#allocation6 + $0x50] sm:$0xff]
    %v144 = vld [vmem:[#allocation6 + $0x58] sm:$0xff]
    %v145 = vld [vmem:[#allocation6 + $0x60] sm:$0xff]
    %v146 = vld [vmem:[#allocation6 + $0x68] sm:$0xff]
    %v147 = vld [vmem:[#allocation6 + $0x70] sm:$0xff]
    %v148 = vld [vmem:[#allocation6 + $0x78] sm:$0xff]
    %v149 = vld [vmem:[%s6] sm:$0x3]
    %v151 = vlaneseq
    %v152 = vshrl.u32 %v151, 7
    %v153 = vsub.s32 0, %v152
    %v154 = vrot.slane %v149, %v153
    %v155 = vlaneseq
    %v156 = vshrl.u32 %v155, 7
    %v157 = vsub.s32 1, %v156
    %v158 = vrot.slane %v149, %v157
    %v177 = vunpack.c.l.b16 %v133
    %v178 = vunpack.c.h.b16 %v133
    %v179 = vunpack.c.l.b16 %v134
    %v180 = vunpack.c.h.b16 %v134
    %v181 = vunpack.c.l.b16 %v135
    %v182 = vunpack.c.h.b16 %v135
    %v183 = vunpack.c.l.b16 %v136
    %v184 = vunpack.c.h.b16 %v136
    %v185 = vunpack.c.l.b16 %v137
    %v186 = vunpack.c.h.b16 %v137
    %v187 = vunpack.c.l.b16 %v138
    %v188 = vunpack.c.h.b16 %v138
    %v189 = vunpack.c.l.b16 %v139
    %v190 = vunpack.c.h.b16 %v139
    %v191 = vunpack.c.l.b16 %v140
    %v192 = vunpack.c.h.b16 %v140
    %v193 = vunpack.c.l.b16 %v141
    %v194 = vunpack.c.h.b16 %v141
    %v195 = vunpack.c.l.b16 %v142
    %v196 = vunpack.c.h.b16 %v142
    %v197 = vunpack.c.l.b16 %v143
    %v198 = vunpack.c.h.b16 %v143
    %v199 = vunpack.c.l.b16 %v144
    %v200 = vunpack.c.h.b16 %v144
    %v201 = vunpack.c.l.b16 %v145
    %v202 = vunpack.c.h.b16 %v145
    %v203 = vunpack.c.l.b16 %v146
    %v204 = vunpack.c.h.b16 %v146
    %v205 = vunpack.c.l.b16 %v147
    %v206 = vunpack.c.h.b16 %v147
    %v207 = vunpack.c.l.b16 %v148
    %v208 = vunpack.c.h.b16 %v148
    %v209 = vpack.c.b16 %v179, %v177
    %v210 = vpack.c.b16 %v180, %v178
    %v211 = vpack.c.b16 %v183, %v181
    %v212 = vpack.c.b16 %v184, %v182
    %v213 = vpack.c.b16 %v187, %v185
    %v214 = vpack.c.b16 %v188, %v186
    %v215 = vpack.c.b16 %v191, %v189
    %v216 = vpack.c.b16 %v192, %v190
    %v217 = vpack.c.b16 %v195, %v193
    %v218 = vpack.c.b16 %v196, %v194
    %v219 = vpack.c.b16 %v199, %v197
    %v220 = vpack.c.b16 %v200, %v198
    %v221 = vpack.c.b16 %v203, %v201
    %v222 = vpack.c.b16 %v204, %v202
    %v223 = vpack.c.b16 %v207, %v205
    %v224 = vpack.c.b16 %v208, %v206
    %241 = vmatprep.subr.bf16.mxu0 %v224
    %242 = vmatpush1.bf16.msra.mxu0 %v223
    %243 = vmatprep.subr.bf16.mxu0 %v222
    %244 = vmatpush1.bf16.msra.mxu0 %v221
    %245 = vmatprep.subr.bf16.mxu0 %v220
    %246 = vmatpush1.bf16.msra.mxu0 %v219
    %247 = vmatprep.subr.bf16.mxu0 %v218
    %248 = vmatpush1.bf16.msra.mxu0 %v217
    %249 = vmatprep.subr.bf16.mxu0 %v216
    %250 = vmatpush1.bf16.msra.mxu0 %v215
    %251 = vmatprep.subr.bf16.mxu0 %v214
    %252 = vmatpush1.bf16.msra.mxu0 %v213
    %253 = vmatprep.subr.bf16.mxu0 %v212
    %254 = vmatpush1.bf16.msra.mxu0 %v211
    %255 = vmatprep.subr.bf16.mxu0 %v210
    %256 = vmatpush1.bf16.msra.mxu0 %v209
    %257 = vmatprep.subr.bf16.mxu0 0
    %258 = vmatpush2.bf16.msra.mxu0 0
    %259 = vmatprep.subr.bf16.mxu0 0
    %260 = vmatpush2.bf16.msra.mxu0 0
    %261 = vmatprep.subr.bf16.mxu0 0
    %262 = vmatpush2.bf16.msra.mxu0 0
    %263 = vmatprep.subr.bf16.mxu0 0
    %264 = vmatpush2.bf16.msra.mxu0 0
    %265 = vmatprep.subr.bf16.mxu0 0
    %266 = vmatpush2.bf16.msra.mxu0 0
    %267 = vmatprep.subr.bf16.mxu0 0
    %268 = vmatpush2.bf16.msra.mxu0 0
    %269 = vmatprep.subr.bf16.mxu0 0
    %270 = vmatpush2.bf16.msra.mxu0 0
    %271 = vmatprep.subr.bf16.mxu0 0
    %272 = vmatpush2.bf16.msra.mxu0 0
    %273 = vmatprep.mubr.bf16.mxu0 0
    %274 = vmatmul.mubr.bf16.gmra.mxu0 %v132
    %v275 = vpop.f32.mrf.mxu0
    %v276 = vadd.f32 %v154, %v275
    %v277 = vpop.f32.mrf.mxu0
    %v278 = vadd.f32 %v158, %v277
    %v279 = vpop.f32.mrf.mxu0
    %v280 = vpop.f32.mrf.mxu0
    %281 = vdwg.mxu0
    %282 = vst [vmem:[%s7] sm:$0xff] %v276
    %283 = vst [vmem:[%s7 + $0x8] sm:$0xff] %v278
    // Predicated region
    $region38: #{mlp_forward.1} parent=1 // pred_check
      _
    $region39: #{mlp_forward.1} parent=1 // pred_check_branch
      %285 = sbr.rel (0) target = $region41
    $region40: #{mlp_forward.1} parent=1 // pred_region
      _
    $region41: #{mlp_forward.1} parent=1 // pred_fallthru
      _
    // Predicated region
    $region42: #{mlp_forward.1} parent=1 // pred_check
      _
    $region43: #{mlp_forward.1} parent=1 // pred_check_branch
      %287 = sbr.rel (0) target = $region45
    $region44: #{mlp_forward.1} parent=1 // pred_region
      _
    $region45: #{mlp_forward.1} parent=1 // pred_fallthru
      _
    %288 = vsyncpa [#allocation5], 1
    %289 = vsyncpa [#allocation7], 1

</llo_original>
